<compile_context>
chip_gen: v6e
topology: v6e:2x2x1
jax: 0.10.0
libtpu: 0.0.40
codegen_flags: <defaults>
</compile_context>

<pallas_src>
import functools

import jax
import jax.numpy as jnp
from jax.experimental import pallas as pl
from jax.experimental.pallas import tpu as pltpu


def _conv_block_kernel(x_ref, w_ref, b_ref, m_ref, o_ref, *, W, slope):
    # x_ref: (C_in, M)        one sample's activation, flattened (M = H*W)
    # w_ref: (9, C_out, C_in) packed conv taps, resident across grid steps
    # b_ref: (C_out, 1)       bias (f32), resident
    # m_ref: (2, M)           column masks: row0 kills w==0, row1 kills w==W-1
    # o_ref: (C_out, M)       one sample's output, flattened (N-major layout)
    C_in, M = x_ref.shape
    C_out = o_ref.shape[0]

    x = x_ref[...]
    zpad = jnp.zeros((C_in, W + 1), dtype=x.dtype)
    # Zero-extended flat activation: every tap becomes a static lane-offset
    # slice (in-kernel im2col, no extra HBM traffic).
    xext = jnp.concatenate([zpad, x, zpad], axis=-1)           # (C_in, M + 2W + 2)
    not_left = m_ref[0:1, :]                                   # (1, M)
    not_right = m_ref[1:2, :]                                  # (1, M)

    acc = jnp.zeros((C_out, M), jnp.float32)
    for ky in range(3):
        for kx in range(3):
            t = ky * 3 + kx
            # Flat shift by (ky-1, kx-1): valid because input and output share
            # the same row length W.  Out-of-image rows land in the zero
            # extension; cross-row bleed at the left/right borders is masked.
            off = (W + 1) + (ky - 1) * W + (kx - 1)
            tap = xext[:, off:off + M]                         # (C_in, M)
            if kx == 0:
                tap = tap * not_left
            elif kx == 2:
                tap = tap * not_right
            acc = acc + jnp.dot(w_ref[t], tap,
                                preferred_element_type=jnp.float32)

    acc = acc + b_ref[...]                                     # f32 bias add
    # LeakyReLU via max(x, slope*x); only valid for 0 <= slope <= 1 (asserted).
    out = jnp.maximum(acc, slope * acc)
    o_ref[...] = out.astype(o_ref.dtype)


def _vmem_limit_bytes(C_in, C_out, M, W, in_itemsize, out_itemsize):
    """VMEM budget: double-buffered I/O blocks + in-kernel temporaries."""
    m_ext = M + 2 * (W + 1)
    in_block = C_in * M * in_itemsize
    out_block = C_out * M * out_itemsize
    temporaries = (C_in * m_ext + 2 * C_in * M) * in_itemsize + C_out * M * 4
    resident = 9 * C_out * C_in * in_itemsize + C_out * 4 + 2 * M * in_itemsize
    est = 2 * in_block + 2 * out_block + temporaries + resident
    est = int(est * 1.5) + (1 << 20)
    # Clamp to [32 MiB default scoped .. 64 MiB = v7x physical VMEM].
    return max(32 << 20, min(est, 64 << 20))


def conv_block(x, weight, bias, *, slope=0.2, compute_dtype=None, out_dtype=None):
    """ConvBlock forward: Conv2d(k=3, s=1, p=1) + LeakyReLU(slope).

    x: (N, C_in, H, W), weight: (C_out, C_in, 3, 3), bias: (C_out,).
    """
    N, C_in, H, W = x.shape
    C_out = weight.shape[0]
    assert weight.shape == (C_out, C_in, 3, 3)
    # max(x, slope*x) == LeakyReLU only for slopes in [0, 1] (review concern).
    assert 0.0 <= slope <= 1.0, "LeakyReLU-as-max trick requires 0 <= slope <= 1"
    M = H * W
    if out_dtype is None:
        out_dtype = x.dtype          # bf16 out_dtype is a valid option on v5e
    if compute_dtype is None:
        compute_dtype = x.dtype      # see header: no gratuitous wrapper cast

    # ---- layout plumbing (metadata-only reshapes + tiny constant arrays) ----
    x_flat = x.astype(compute_dtype).reshape(N, C_in, M)            # free reshape
    # (ky, kx)-major packed taps: w_packed[ky*3+kx] is the (C_out, C_in) matrix.
    w_packed = weight.transpose(2, 3, 0, 1).reshape(9, C_out, C_in)
    w_packed = w_packed.astype(compute_dtype)
    b2d = bias.reshape(C_out, 1).astype(jnp.float32)
    # Column masks killing cross-row bleed of the kx=0 / kx=2 taps.
    wcol = jnp.arange(M, dtype=jnp.int32) % W
    masks = jnp.stack([wcol != 0, wcol != W - 1]).astype(compute_dtype)  # (2, M)

    in_itemsize = jnp.dtype(compute_dtype).itemsize
    out_itemsize = jnp.dtype(out_dtype).itemsize
    vmem_limit = _vmem_limit_bytes(C_in, C_out, M, W, in_itemsize, out_itemsize)

    x_spec_kwargs = {}
    if N >= 3 and C_in * M * in_itemsize < (1 << 20):
        # Long grid of small tiles: deepen the input pipeline so the per-step
        # DMAs stay back-to-back (per-step compute is tiny).
        x_spec_kwargs["pipeline_mode"] = pl.Buffered(3)
    x_spec = pl.BlockSpec((None, C_in, M), lambda n: (n, 0, 0), **x_spec_kwargs)

    kernel = functools.partial(_conv_block_kernel, W=W, slope=slope)
    out_flat = pl.pallas_call(
        kernel,
        out_shape=jax.ShapeDtypeStruct((N, C_out, M), out_dtype),
        grid_spec=pltpu.PrefetchScalarGridSpec(
            num_scalar_prefetch=0,
            grid=(N,),
            in_specs=[
                x_spec,                                                # activation
                pl.BlockSpec((9, C_out, C_in), lambda n: (0, 0, 0)),   # weights
                pl.BlockSpec((C_out, 1), lambda n: (0, 0)),            # bias
                pl.BlockSpec((2, M), lambda n: (0, 0)),                # col masks
            ],
            out_specs=pl.BlockSpec((None, C_out, M), lambda n: (n, 0, 0)),
        ),
        compiler_params=pltpu.CompilerParams(
            dimension_semantics=("parallel",),
            vmem_limit_bytes=vmem_limit),
    )(x_flat, w_packed, b2d, masks)

    # N-major flat output -> NCHW is metadata-only (no transpose round trip).
    return out_flat.reshape(N, C_out, H, W)


if __name__ == "__main__":
    # ConvBlock(dim=2, in_channels=4, out_channels=8, stride=1)
    N, C_in, C_out, H, W = 2, 4, 8, 16, 16

    key = jax.random.PRNGKey(0)
    kx_, kw_, kb_ = jax.random.split(key, 3)
    x = jax.random.normal(kx_, (N, C_in, H, W), dtype=jnp.float32)
    weight = 0.1 * jax.random.normal(kw_, (C_out, C_in, 3, 3), dtype=jnp.float32)
    bias = 0.1 * jax.random.normal(kb_, (C_out,), dtype=jnp.float32)

    out = jax.block_until_ready(conv_block(x, weight, bias))

    # Reference: XLA conv + bias + LeakyReLU(0.2).
    ref = jax.lax.conv_general_dilated(
        x, weight, window_strides=(1, 1), padding=((1, 1), (1, 1)),
        dimension_numbers=("NCHW", "OIHW", "NCHW"))
    ref = ref + bias.reshape(1, C_out, 1, 1)
    ref = jnp.where(ref >= 0, ref, 0.2 * ref)

    assert out.shape == (N, C_out, H, W)
    assert jnp.allclose(out, ref, atol=1e-4, rtol=1e-4), \
        float(jnp.max(jnp.abs(out - ref)))

    # bf16 MXU-operand path (bf16-resident networks / v6e-v7x preference);
    # accumulation and epilogue stay f32.
    out_bf16 = jax.block_until_ready(
        conv_block(x, weight, bias, compute_dtype=jnp.bfloat16))
    assert jnp.allclose(out_bf16, ref, atol=5e-2, rtol=5e-2)

    print("KERNEL_OK")
</pallas_src>

<mosaic_0001>
module attributes {stable_mosaic.version = 11 : i64} {
  func.func @_conv_block_kernel(%arg0: i32, %arg1: memref<1x4x256xf32, #tpu.memory_space<vmem>>, %arg2: memref<9x8x4xf32, #tpu.memory_space<vmem>>, %arg3: memref<8x1xf32, #tpu.memory_space<vmem>>, %arg4: memref<2x256xf32, #tpu.memory_space<vmem>>, %arg5: memref<1x8x256xf32, #tpu.memory_space<vmem>>) attributes {dimension_semantics = [#tpu.dimension_semantics<parallel>], iteration_bounds = array<i64: 2>, scalar_prefetch = 0 : i64, scratch_operands = 0 : i64, tpu.core_type = #tpu.core_type<tc>, window_params = [{transform_indices = @transform_0, window_bounds = array<i64: 1, 4, 256>}, {pipeline_mode = #tpu.pipeline_mode<synchronous>, transform_indices = @transform_1, window_bounds = array<i64: 9, 8, 4>}, {pipeline_mode = #tpu.pipeline_mode<synchronous>, transform_indices = @transform_2, window_bounds = array<i64: 8, 1>}, {pipeline_mode = #tpu.pipeline_mode<synchronous>, transform_indices = @transform_3, window_bounds = array<i64: 2, 256>}, {transform_indices = @transform_4, window_bounds = array<i64: 1, 8, 256>}]} {
    %c0 = arith.constant 0 : index
    %c0_0 = arith.constant 0 : index
    %c0_1 = arith.constant 0 : index
    %0 = vector.load %arg1[%c0, %c0_0, %c0_1] : memref<1x4x256xf32, #tpu.memory_space<vmem>>, vector<1x4x256xf32>
    %1 = vector.shape_cast %0 : vector<1x4x256xf32> to vector<4x256xf32>
    %cst = arith.constant 0.000000e+00 : f32
    %2 = vector.broadcast %cst : f32 to vector<4x17xf32>
    %3 = tpu.concatenate %2, %1, %2 in 1 : vector<4x17xf32>, vector<4x256xf32>, vector<4x17xf32> -> vector<4x290xf32>
    %c0_2 = arith.constant 0 : index
    %c0_3 = arith.constant 0 : index
    %4 = vector.load %arg4[%c0_2, %c0_3] : memref<2x256xf32, #tpu.memory_space<vmem>>, vector<1x256xf32>
    %c1 = arith.constant 1 : index
    %c0_4 = arith.constant 0 : index
    %5 = vector.load %arg4[%c1, %c0_4] : memref<2x256xf32, #tpu.memory_space<vmem>>, vector<1x256xf32>
    %cst_5 = arith.constant 0.000000e+00 : f32
    %6 = vector.broadcast %cst_5 : f32 to vector<8x256xf32>
    %7 = vector.extract_strided_slice %3 {offsets = [0, 0], sizes = [4, 256], strides = [1, 1]} : vector<4x290xf32> to vector<4x256xf32>
    %8 = vector.broadcast %4 : vector<1x256xf32> to vector<4x256xf32>
    %9 = arith.mulf %7, %8 : vector<4x256xf32>
    %c0_6 = arith.constant 0 : index
    %c0_7 = arith.constant 0 : index
    %c0_8 = arith.constant 0 : index
    %10 = vector.load %arg2[%c0_6, %c0_7, %c0_8] : memref<9x8x4xf32, #tpu.memory_space<vmem>>, vector<1x8x4xf32>
    %11 = vector.shape_cast %10 : vector<1x8x4xf32> to vector<8x4xf32>
    %cst_9 = arith.constant dense<0.000000e+00> : vector<8x256xf32>
    %12 = tpu.matmul %11, %9, %cst_9 {dimension_numbers = #tpu.dot_dimension_numbers<[1], [0], [0], [1], [0, 0, 1, 1], [], []>} : vector<8x4xf32>, vector<4x256xf32>, vector<8x256xf32> -> vector<8x256xf32>
    %13 = arith.addf %6, %12 : vector<8x256xf32>
    %14 = vector.extract_strided_slice %3 {offsets = [0, 1], sizes = [4, 256], strides = [1, 1]} : vector<4x290xf32> to vector<4x256xf32>
    %c1_10 = arith.constant 1 : index
    %c0_11 = arith.constant 0 : index
    %c0_12 = arith.constant 0 : index
    %15 = vector.load %arg2[%c1_10, %c0_11, %c0_12] : memref<9x8x4xf32, #tpu.memory_space<vmem>>, vector<1x8x4xf32>
    %16 = vector.shape_cast %15 : vector<1x8x4xf32> to vector<8x4xf32>
    %cst_13 = arith.constant dense<0.000000e+00> : vector<8x256xf32>
    %17 = tpu.matmul %16, %14, %cst_13 {dimension_numbers = #tpu.dot_dimension_numbers<[1], [0], [0], [1], [0, 0, 1, 1], [], []>} : vector<8x4xf32>, vector<4x256xf32>, vector<8x256xf32> -> vector<8x256xf32>
    %18 = arith.addf %13, %17 : vector<8x256xf32>
    %19 = vector.extract_strided_slice %3 {offsets = [0, 2], sizes = [4, 256], strides = [1, 1]} : vector<4x290xf32> to vector<4x256xf32>
    %20 = vector.broadcast %5 : vector<1x256xf32> to vector<4x256xf32>
    %21 = arith.mulf %19, %20 : vector<4x256xf32>
    %c2 = arith.constant 2 : index
    %c0_14 = arith.constant 0 : index
    %c0_15 = arith.constant 0 : index
    %22 = vector.load %arg2[%c2, %c0_14, %c0_15] : memref<9x8x4xf32, #tpu.memory_space<vmem>>, vector<1x8x4xf32>
    %23 = vector.shape_cast %22 : vector<1x8x4xf32> to vector<8x4xf32>
    %cst_16 = arith.constant dense<0.000000e+00> : vector<8x256xf32>
    %24 = tpu.matmul %23, %21, %cst_16 {dimension_numbers = #tpu.dot_dimension_numbers<[1], [0], [0], [1], [0, 0, 1, 1], [], []>} : vector<8x4xf32>, vector<4x256xf32>, vector<8x256xf32> -> vector<8x256xf32>
    %25 = arith.addf %18, %24 : vector<8x256xf32>
    %26 = vector.extract_strided_slice %3 {offsets = [0, 16], sizes = [4, 256], strides = [1, 1]} : vector<4x290xf32> to vector<4x256xf32>
    %27 = vector.broadcast %4 : vector<1x256xf32> to vector<4x256xf32>
    %28 = arith.mulf %26, %27 : vector<4x256xf32>
    %c3 = arith.constant 3 : index
    %c0_17 = arith.constant 0 : index
    %c0_18 = arith.constant 0 : index
    %29 = vector.load %arg2[%c3, %c0_17, %c0_18] : memref<9x8x4xf32, #tpu.memory_space<vmem>>, vector<1x8x4xf32>
    %30 = vector.shape_cast %29 : vector<1x8x4xf32> to vector<8x4xf32>
    %cst_19 = arith.constant dense<0.000000e+00> : vector<8x256xf32>
    %31 = tpu.matmul %30, %28, %cst_19 {dimension_numbers = #tpu.dot_dimension_numbers<[1], [0], [0], [1], [0, 0, 1, 1], [], []>} : vector<8x4xf32>, vector<4x256xf32>, vector<8x256xf32> -> vector<8x256xf32>
    %32 = arith.addf %25, %31 : vector<8x256xf32>
    %33 = vector.extract_strided_slice %3 {offsets = [0, 17], sizes = [4, 256], strides = [1, 1]} : vector<4x290xf32> to vector<4x256xf32>
    %c4 = arith.constant 4 : index
    %c0_20 = arith.constant 0 : index
    %c0_21 = arith.constant 0 : index
    %34 = vector.load %arg2[%c4, %c0_20, %c0_21] : memref<9x8x4xf32, #tpu.memory_space<vmem>>, vector<1x8x4xf32>
    %35 = vector.shape_cast %34 : vector<1x8x4xf32> to vector<8x4xf32>
    %cst_22 = arith.constant dense<0.000000e+00> : vector<8x256xf32>
    %36 = tpu.matmul %35, %33, %cst_22 {dimension_numbers = #tpu.dot_dimension_numbers<[1], [0], [0], [1], [0, 0, 1, 1], [], []>} : vector<8x4xf32>, vector<4x256xf32>, vector<8x256xf32> -> vector<8x256xf32>
    %37 = arith.addf %32, %36 : vector<8x256xf32>
    %38 = vector.extract_strided_slice %3 {offsets = [0, 18], sizes = [4, 256], strides = [1, 1]} : vector<4x290xf32> to vector<4x256xf32>
    %39 = vector.broadcast %5 : vector<1x256xf32> to vector<4x256xf32>
    %40 = arith.mulf %38, %39 : vector<4x256xf32>
    %c5 = arith.constant 5 : index
    %c0_23 = arith.constant 0 : index
    %c0_24 = arith.constant 0 : index
    %41 = vector.load %arg2[%c5, %c0_23, %c0_24] : memref<9x8x4xf32, #tpu.memory_space<vmem>>, vector<1x8x4xf32>
    %42 = vector.shape_cast %41 : vector<1x8x4xf32> to vector<8x4xf32>
    %cst_25 = arith.constant dense<0.000000e+00> : vector<8x256xf32>
    %43 = tpu.matmul %42, %40, %cst_25 {dimension_numbers = #tpu.dot_dimension_numbers<[1], [0], [0], [1], [0, 0, 1, 1], [], []>} : vector<8x4xf32>, vector<4x256xf32>, vector<8x256xf32> -> vector<8x256xf32>
    %44 = arith.addf %37, %43 : vector<8x256xf32>
    %45 = vector.extract_strided_slice %3 {offsets = [0, 32], sizes = [4, 256], strides = [1, 1]} : vector<4x290xf32> to vector<4x256xf32>
    %46 = vector.broadcast %4 : vector<1x256xf32> to vector<4x256xf32>
    %47 = arith.mulf %45, %46 : vector<4x256xf32>
    %c6 = arith.constant 6 : index
    %c0_26 = arith.constant 0 : index
    %c0_27 = arith.constant 0 : index
    %48 = vector.load %arg2[%c6, %c0_26, %c0_27] : memref<9x8x4xf32, #tpu.memory_space<vmem>>, vector<1x8x4xf32>
    %49 = vector.shape_cast %48 : vector<1x8x4xf32> to vector<8x4xf32>
    %cst_28 = arith.constant dense<0.000000e+00> : vector<8x256xf32>
    %50 = tpu.matmul %49, %47, %cst_28 {dimension_numbers = #tpu.dot_dimension_numbers<[1], [0], [0], [1], [0, 0, 1, 1], [], []>} : vector<8x4xf32>, vector<4x256xf32>, vector<8x256xf32> -> vector<8x256xf32>
    %51 = arith.addf %44, %50 : vector<8x256xf32>
    %52 = vector.extract_strided_slice %3 {offsets = [0, 33], sizes = [4, 256], strides = [1, 1]} : vector<4x290xf32> to vector<4x256xf32>
    %c7 = arith.constant 7 : index
    %c0_29 = arith.constant 0 : index
    %c0_30 = arith.constant 0 : index
    %53 = vector.load %arg2[%c7, %c0_29, %c0_30] : memref<9x8x4xf32, #tpu.memory_space<vmem>>, vector<1x8x4xf32>
    %54 = vector.shape_cast %53 : vector<1x8x4xf32> to vector<8x4xf32>
    %cst_31 = arith.constant dense<0.000000e+00> : vector<8x256xf32>
    %55 = tpu.matmul %54, %52, %cst_31 {dimension_numbers = #tpu.dot_dimension_numbers<[1], [0], [0], [1], [0, 0, 1, 1], [], []>} : vector<8x4xf32>, vector<4x256xf32>, vector<8x256xf32> -> vector<8x256xf32>
    %56 = arith.addf %51, %55 : vector<8x256xf32>
    %57 = vector.extract_strided_slice %3 {offsets = [0, 34], sizes = [4, 256], strides = [1, 1]} : vector<4x290xf32> to vector<4x256xf32>
    %58 = vector.broadcast %5 : vector<1x256xf32> to vector<4x256xf32>
    %59 = arith.mulf %57, %58 : vector<4x256xf32>
    %c8 = arith.constant 8 : index
    %c0_32 = arith.constant 0 : index
    %c0_33 = arith.constant 0 : index
    %60 = vector.load %arg2[%c8, %c0_32, %c0_33] : memref<9x8x4xf32, #tpu.memory_space<vmem>>, vector<1x8x4xf32>
    %61 = vector.shape_cast %60 : vector<1x8x4xf32> to vector<8x4xf32>
    %cst_34 = arith.constant dense<0.000000e+00> : vector<8x256xf32>
    %62 = tpu.matmul %61, %59, %cst_34 {dimension_numbers = #tpu.dot_dimension_numbers<[1], [0], [0], [1], [0, 0, 1, 1], [], []>} : vector<8x4xf32>, vector<4x256xf32>, vector<8x256xf32> -> vector<8x256xf32>
    %63 = arith.addf %56, %62 : vector<8x256xf32>
    %c0_35 = arith.constant 0 : index
    %c0_36 = arith.constant 0 : index
    %64 = vector.load %arg3[%c0_35, %c0_36] : memref<8x1xf32, #tpu.memory_space<vmem>>, vector<8x1xf32>
    %65 = vector.broadcast %64 : vector<8x1xf32> to vector<8x256xf32>
    %66 = arith.addf %63, %65 : vector<8x256xf32>
    %cst_37 = arith.constant 2.000000e-01 : f32
    %67 = vector.broadcast %cst_37 : f32 to vector<8x256xf32>
    %68 = arith.mulf %67, %66 : vector<8x256xf32>
    %69 = arith.maximumf %66, %68 : vector<8x256xf32>
    %c0_38 = arith.constant 0 : index
    %c0_39 = arith.constant 0 : index
    %c0_40 = arith.constant 0 : index
    %70 = vector.load %arg5[%c0_38, %c0_39, %c0_40] : memref<1x8x256xf32, #tpu.memory_space<vmem>>, vector<1x8x256xf32>
    %71 = vector.shape_cast %70 : vector<1x8x256xf32> to vector<8x256xf32>
    %72 = vector.shape_cast %69 : vector<8x256xf32> to vector<1x8x256xf32>
    tpu.vector_store %arg5[%c0_38, %c0_39, %c0_40], %72 {strides = array<i32>} : memref<1x8x256xf32, #tpu.memory_space<vmem>>, vector<1x8x256xf32>,
    return
  }
  func.func @transform_0(%arg0: i32) -> (i32, i32, i32) {
    %c0_i32 = arith.constant 0 : i32
    %c0_i32_0 = arith.constant 0 : i32
    %c0_i32_1 = arith.constant 0 : i32
    return %arg0, %c0_i32, %c0_i32_0 : i32, i32, i32
  }
  func.func @transform_1(%arg0: i32) -> (i32, i32, i32) {
    %c0_i32 = arith.constant 0 : i32
    %c0_i32_0 = arith.constant 0 : i32
    %c0_i32_1 = arith.constant 0 : i32
    %c0_i32_2 = arith.constant 0 : i32
    return %c0_i32, %c0_i32_0, %c0_i32_1 : i32, i32, i32
  }
  func.func @transform_2(%arg0: i32) -> (i32, i32) {
    %c0_i32 = arith.constant 0 : i32
    %c0_i32_0 = arith.constant 0 : i32
    %c0_i32_1 = arith.constant 0 : i32
    return %c0_i32, %c0_i32_0 : i32, i32
  }
  func.func @transform_3(%arg0: i32) -> (i32, i32) {
    %c0_i32 = arith.constant 0 : i32
    %c0_i32_0 = arith.constant 0 : i32
    %c0_i32_1 = arith.constant 0 : i32
    return %c0_i32, %c0_i32_0 : i32, i32
  }
  func.func @transform_4(%arg0: i32) -> (i32, i32, i32) {
    %c0_i32 = arith.constant 0 : i32
    %c0_i32_0 = arith.constant 0 : i32
    %c0_i32_1 = arith.constant 0 : i32
    return %arg0, %c0_i32, %c0_i32_0 : i32, i32, i32
  }
}

</mosaic_0001>

<llo_original>
// kernel: tpu_custom_call.1
$region0: #{tpu_custom_call.1}
  #allocation0 [shape = 'u32[]', space=smem, size = 0x4, offset = 0x4, fixed_abs, tag = 'smem constant byte address 0x4 - core index']
  #allocation1 [shape = 'u32[144,128]{1,0:T(1,128)}', space=vmem, size = 0x12000, scoped, tag = 'internal scratch']
  %s0 = inlined_call_operand.vmem [shape: f32[2,4,256], index: 0, kind: input, shape index: {}]
  %s1 = inlined_call_operand.vmem [shape: f32[9,8,4], index: 1, kind: input, shape index: {}]
  %s2 = inlined_call_operand.vmem [shape: f32[8,1], index: 2, kind: input, shape index: {}]
  %s3 = inlined_call_operand.vmem [shape: f32[2,256], index: 3, kind: input, shape index: {}]
  %s4 = inlined_call_operand.hbm [shape: f32[2,8,256], index: 4, kind: output, shape index: {}]
  %s5 = sld [smem:[#allocation0]]
  $region49: #{tpu_custom_call.1} parent=0
    _
  %s7 = ssub.s32 1, %s5
  %s8 = scalar_select 0, %s7, %s5
  $region1: #{tpu_custom_call.1} parent=0
    #allocation2 [shape = 'u8[16384]{0}', space=vmem, size = 0x4000, scoped, tag = 'output window, operand 0']
    #allocation3 [shape = 's32[2]{0}', space=sflag, size = 0x8, scoped, tag = 'scoped memory for tpu_custom_call.1']
    %9 = vsyncpa [#allocation3], 0
    %s10 = scalar_lea.sflag [#allocation3], 1
    %11 = vsyncpa %s10, 0
    loop: start=0, step=1, limit=4
    $region2: #{tpu_custom_call.1} parent=1 // loop_pre_header
      _
    $region3: #{tpu_custom_call.1} parent=1 // loop_header
      %s13 = sphi 0, %s17
      %p14 = scmp.ge.s32.totalorder %s13, 4
      %s23 = sphi 0, %s25
      %s26 = sphi 0, %s23
      %s27 = sphi 0, %s26
      %s43 = sphi 0, %s27
      %s47 = sphi 0, %s47
      %s49 = sphi 0, %s47
      %s50 = sphi 0, %s49
      %s64 = sphi 0, %s50
      %s68 = sphi 0, %s68
      %s70 = sphi 0, %s68
      %s71 = sphi 0, %s70
      %s85 = sphi 0, %s71
      %s89 = sphi 0, %s89
      %s91 = sphi 0, %s89
      %s92 = sphi 0, %s91
      %s106 = sphi 0, %s92
      %s112 = sphi 0, %s114
      %s115 = sphi 0, %s112
      %s116 = sphi 0, %s115
      %s132 = sphi 0, %s116
    $region4: #{tpu_custom_call.1} parent=1 // loop_header_branch
      %16 = sbr.rel (%p14) target = $region8
    $region5: #{tpu_custom_call.1} parent=1 // loop_body
      %s18 = ssub.s32 %s13, 1
      %s19 = ssub.s32 %s13, 2
      %s20 = sadd.s32 %s13, 1
      %s21 = ssub.s32 %s13, %s20
      %p22 = scmp.eq.s32.totalorder %s21, 0
      %s24 = sadd.s32 %s23, 1
      %s25 = scalar_select %p22, %s23, %s24
      %p28 = pneg %p22
      %p29 = scmp.eq.s32.totalorder %s13, 1
      %p30 = por %p28, %p29
      %p31 = scmp.ne.s32.totalorder %s23, %s26
      %p32 = scmp.eq.s32.totalorder %s13, 0
      %p33 = por %p31, %p32
      %p34 = scmp.ne.s32.totalorder %s23, %s26
      %p35 = scmp.eq.s32.totalorder %s18, 1
      %p36 = por %p34, %p35
      %p37 = scmp.ne.s32.totalorder %s26, %s27
      %p38 = scmp.eq.s32.totalorder %s18, 0
      %p39 = por %p37, %p38
      %p40 = scmp.ne.s32.totalorder %s26, %s27
      %p41 = scmp.eq.s32.totalorder %s19, 1
      %p42 = por %p40, %p41
      %p44 = scmp.ne.s32.totalorder %s27, %s43
      %p45 = scmp.eq.s32.totalorder %s19, 0
      %p46 = por %p44, %p45
      %s48 = sadd.s32 %s47, 1
      %p51 = scmp.eq.s32.totalorder %s13, 1
      %p52 = scmp.ne.s32.totalorder %s47, %s49
      %p53 = scmp.eq.s32.totalorder %s13, 0
      %p54 = por %p52, %p53
      %p55 = scmp.ne.s32.totalorder %s47, %s49
      %p56 = scmp.eq.s32.totalorder %s18, 1
      %p57 = por %p55, %p56
      %p58 = scmp.ne.s32.totalorder %s49, %s50
      %p59 = scmp.eq.s32.totalorder %s18, 0
      %p60 = por %p58, %p59
      %p61 = scmp.ne.s32.totalorder %s49, %s50
      %p62 = scmp.eq.s32.totalorder %s19, 1
      %p63 = por %p61, %p62
      %p65 = scmp.ne.s32.totalorder %s50, %s64
      %p66 = scmp.eq.s32.totalorder %s19, 0
      %p67 = por %p65, %p66
      %s69 = sadd.s32 %s68, 1
      %p72 = scmp.eq.s32.totalorder %s13, 1
      %p73 = scmp.ne.s32.totalorder %s68, %s70
      %p74 = scmp.eq.s32.totalorder %s13, 0
      %p75 = por %p73, %p74
      %p76 = scmp.ne.s32.totalorder %s68, %s70
      %p77 = scmp.eq.s32.totalorder %s18, 1
      %p78 = por %p76, %p77
      %p79 = scmp.ne.s32.totalorder %s70, %s71
      %p80 = scmp.eq.s32.totalorder %s18, 0
      %p81 = por %p79, %p80
      %p82 = scmp.ne.s32.totalorder %s70, %s71
      %p83 = scmp.eq.s32.totalorder %s19, 1
      %p84 = por %p82, %p83
      %p86 = scmp.ne.s32.totalorder %s71, %s85
      %p87 = scmp.eq.s32.totalorder %s19, 0
      %p88 = por %p86, %p87
      %s90 = sadd.s32 %s89, 1
      %p93 = scmp.eq.s32.totalorder %s13, 1
      %p94 = scmp.ne.s32.totalorder %s89, %s91
      %p95 = scmp.eq.s32.totalorder %s13, 0
      %p96 = por %p94, %p95
      %p97 = scmp.ne.s32.totalorder %s89, %s91
      %p98 = scmp.eq.s32.totalorder %s18, 1
      %p99 = por %p97, %p98
      %p100 = scmp.ne.s32.totalorder %s91, %s92
      %p101 = scmp.eq.s32.totalorder %s18, 0
      %p102 = por %p100, %p101
      %p103 = scmp.ne.s32.totalorder %s91, %s92
      %p104 = scmp.eq.s32.totalorder %s19, 1
      %p105 = por %p103, %p104
      %p107 = scmp.ne.s32.totalorder %s92, %s106
      %p108 = scmp.eq.s32.totalorder %s19, 0
      %p109 = por %p107, %p108
      %s110 = ssub.s32 %s13, %s20
      %p111 = scmp.eq.s32.totalorder %s110, 0
      %s113 = sadd.s32 %s112, 1
      %s114 = scalar_select %p111, %s112, %s113
      %p117 = pneg %p111
      %p118 = scmp.eq.s32.totalorder %s13, 1
      %p119 = por %p117, %p118
      %p120 = scmp.ne.s32.totalorder %s112, %s115
      %p121 = scmp.eq.s32.totalorder %s13, 0
      %p122 = por %p120, %p121
      %p123 = scmp.ne.s32.totalorder %s112, %s115
      %p124 = scmp.eq.s32.totalorder %s18, 1
      %p125 = por %p123, %p124
      %p126 = scmp.ne.s32.totalorder %s115, %s116
      %p127 = scmp.eq.s32.totalorder %s18, 0
      %p128 = por %p126, %p127
      %p129 = scmp.ne.s32.totalorder %s115, %s116
      %p130 = scmp.eq.s32.totalorder %s19, 1
      %p131 = por %p129, %p130
      %p133 = scmp.ne.s32.totalorder %s116, %s132
      %p134 = scmp.eq.s32.totalorder %s19, 0
      %p135 = por %p133, %p134
      %p136 = scmp.le.s32.totalorder 1, %s13
      %p137 = scmp.lt.s32.totalorder %s13, 3
      %p138 = pnand %p136, %p137
      %p139 = pneg %p138
      // Predicated region
      $region9: #{tpu_custom_call.1} parent=5 // pred_check
        _
      $region10: #{tpu_custom_call.1} parent=5 // pred_check_branch
        %141 = sbr.rel (%p138) target = $region12
      $region11: #{tpu_custom_call.1} parent=5 // pred_region
        %s142 = ssub.s32 %s13, 1
        // Predicated region
        $region13: #{tpu_custom_call.1} parent=11 // pred_check
          %p143 = pneg %p60
        $region14: #{tpu_custom_call.1} parent=11 // pred_check_branch
          %145 = sbr.rel (%p143) target = $region16
        $region15: #{tpu_custom_call.1} parent=11 // pred_region
          _
        $region16: #{tpu_custom_call.1} parent=11 // pred_fallthru
          _
        // Predicated region
        $region17: #{tpu_custom_call.1} parent=11 // pred_check
          %p146 = pneg %p81
        $region18: #{tpu_custom_call.1} parent=11 // pred_check_branch
          %148 = sbr.rel (%p146) target = $region20
        $region19: #{tpu_custom_call.1} parent=11 // pred_region
          _
        $region20: #{tpu_custom_call.1} parent=11 // pred_fallthru
          _
        // Predicated region
        $region21: #{tpu_custom_call.1} parent=11 // pred_check
          %p149 = pneg %p102
        $region22: #{tpu_custom_call.1} parent=11 // pred_check_branch
          %151 = sbr.rel (%p149) target = $region24
        $region23: #{tpu_custom_call.1} parent=11 // pred_region
          _
        $region24: #{tpu_custom_call.1} parent=11 // pred_fallthru
          _
      $region12: #{tpu_custom_call.1} parent=5 // pred_fallthru
        _
      %p152 = scmp.lt.s32.totalorder %s13, 2
      // Predicated region
      $region25: #{tpu_custom_call.1} parent=5 // pred_check
        %p153 = pneg %p152
      $region26: #{tpu_custom_call.1} parent=5 // pred_check_branch
        %155 = sbr.rel (%p153) target = $region28
      $region27: #{tpu_custom_call.1} parent=5 // pred_region
        // Predicated region
        $region29: #{tpu_custom_call.1} parent=27 // pred_check
          %p156 = pneg %p33
        $region30: #{tpu_custom_call.1} parent=27 // pred_check_branch
          %158 = sbr.rel (%p156) target = $region32
        $region31: #{tpu_custom_call.1} parent=27 // pred_region
          %p159 = scmp.lt.s32.totalorder %s13, 1
          %s160 = scalar_select %p159, %s13, 1
          %s161 = smul.addr %s160, 2
          %s162 = smul.addr %s161, 4
          %s163 = scalar_lea.vmem %s0, %s162
        $region32: #{tpu_custom_call.1} parent=27 // pred_fallthru
          _
      $region28: #{tpu_custom_call.1} parent=5 // pred_fallthru
        _
      %p164 = scmp.le.s32.totalorder 1, %s13
      %p165 = scmp.lt.s32.totalorder %s13, 3
      %p166 = pnand %p164, %p165
      %p167 = pneg %p166
      // Predicated region
      $region33: #{tpu_custom_call.1} parent=5 // pred_check
        _
      $region34: #{tpu_custom_call.1} parent=5 // pred_check_branch
        %169 = sbr.rel (%p166) target = $region36
      $region35: #{tpu_custom_call.1} parent=5 // pred_region
        %s170 = ssub.s32 %s13, 1
        %p171 = scmp.lt.s32.totalorder %s18, 1
        %s172 = scalar_select %p171, %s18, 1
        %s173 = smul.addr %s172, 2
        %s174 = smul.addr %s173, 4
        %s175 = scalar_lea.vmem %s0, %s174
        %p176 = pneg %p39
        %p177 = pneg %p36
        %p178 = pneg %p60
        %p179 = pneg %p57
        %p180 = pneg %p81
        %p181 = pneg %p78
        %p182 = pneg %p102
        %p183 = pneg %p99
        %p184 = pneg %p128
        %p185 = pneg %p125
        %s186 = sand.u32 %s115, 1
        %s187 = scalar_lea.sflag [#allocation3], %s186
        %s188 = sand.u32 %s115, 1
        %s189 = smul.addr %s188, 16
        %s190 = scalar_lea.vmem [#allocation2], %s189
        %p191 = scmp.lt.s32.totalorder %s18, 1
        %s192 = scalar_select %p191, %s18, 1
        %s193 = smul.addr %s192, 2
        %s194 = smul.addr %s193, 4
        %s195 = scalar_lea.vmem %s0, %s194
        %v196 = vld [vmem:[%s195] sm:$0xff]
        %v198 = vcombine.high %v196, %v196
        %199 = vrot.lane.b32.xlu0 %v196, 17
        %v200 = vpop.permute.xlu0 %199
        %201 = vrot.lane.b32.xlu0 %v198, 17
        %v202 = vpop.permute.xlu0 %201
        %vm203 = vcmask 138240
        %v204 = vsel %vm203, %v200, %v202
        %v208 = vsel %vm203, 0.0, %v200
        %v209 = vsel %vm203, %v202, 0.0
        %v210 = vld [vmem:[%s3] ss:$2 sm:$0x3]
        %s211 = scalar_lea.vmem %s3, 1
        %v212 = vld [vmem:[%s211] ss:$2 sm:$0x3]
        %v214 = vlaneseq
        %v215 = vshrl.u32 %v214, 7
        %v216 = vsub.s32 0, %v215
        %v217 = vrot.slane %v210, %v216
        %v218 = vlaneseq
        %v219 = vshrl.u32 %v218, 7
        %v220 = vsub.s32 1, %v219
        %v221 = vrot.slane %v210, %v220
        %v224 = vmul.f32 %v208, %v217
        %v225 = vmul.f32 %v204, %v221
        %v226 = vld [vmem:[%s1] sm:$0xff]
        %s227 = scalar_lea.vmem %s1, 8
        %v228 = vld [vmem:[%s227] sm:$0xff]
        %231 = vrot.lane.b32.xlu0 %v208, 127
        %v232 = vpop.permute.xlu0 %231
        %233 = vrot.lane.b32.xlu0 %v204, 127
        %v234 = vpop.permute.xlu0 %233
        %235 = vrot.lane.b32.xlu0 %v209, 127
        %v236 = vpop.permute.xlu0 %235
        %vm237 = vcmask 1039360
        %v238 = vsel %vm237, %v232, %v234
        %v239 = vsel %vm237, %v234, %v236
        %vm240 = vcmask 31744
        %v242 = vsel %vm240, %v228, 0
        %vm244 = vcmask 1043456
        %v245 = vsel %vm244, %v238, 0
        %v247 = vsel %vm244, %v239, 0
        %249 = vmatprep.subr.mxu0 0.0
        %250 = vmatpush1.msra.mxu0 0.0
        %251 = vmatprep.subr.mxu0 0.0
        %252 = vmatpush1.msra.mxu0 0.0
        %253 = vmatprep.subr.mxu0 0.0
        %254 = vmatpush1.msra.mxu0 0.0
        %255 = vmatprep.subr.mxu0 0.0
        %256 = vmatpush1.msra.mxu0 0.0
        %257 = vmatprep.subr.mxu0 0.0
        %258 = vmatpush1.msra.mxu0 0.0
        %259 = vmatprep.subr.mxu0 0.0
        %260 = vmatpush1.msra.mxu0 0.0
        %261 = vmatprep.subr.mxu0 0.0
        %262 = vmatpush1.msra.mxu0 0.0
        %263 = vmatprep.subr.mxu0 0.0
        %264 = vmatpush1.msra.mxu0 0.0
        %265 = vmatprep.subr.mxu0 0.0
        %266 = vmatpush1.msra.mxu0 0.0
        %267 = vmatprep.subr.mxu0 0.0
        %268 = vmatpush1.msra.mxu0 0.0
        %269 = vmatprep.subr.mxu0 0.0
        %270 = vmatpush1.msra.mxu0 0.0
        %271 = vmatprep.subr.mxu0 0.0
        %272 = vmatpush1.msra.mxu0 0.0
        %273 = vmatprep.subr.mxu0 0.0
        %274 = vmatpush1.msra.mxu0 0.0
        %275 = vmatprep.subr.mxu0 0.0
        %276 = vmatpush1.msra.mxu0 0.0
        %277 = vmatprep.subr.mxu0 0.0
        %278 = vmatpush1.msra.mxu0 0.0
        %279 = vmatprep.subr.mxu0 %v247
        %280 = vmatpush1.msra.mxu0 %v245
        %281 = vmatprep.subr.mxu0 0.0
        %282 = vmatpush2.msra.mxu0 0.0
        %283 = vmatprep.subr.mxu0 0.0
        %284 = vmatpush2.msra.mxu0 0.0
        %285 = vmatprep.subr.mxu0 0.0
        %286 = vmatpush2.msra.mxu0 0.0
        %287 = vmatprep.subr.mxu0 0.0
        %288 = vmatpush2.msra.mxu0 0.0
        %289 = vmatprep.subr.mxu0 0.0
        %290 = vmatpush2.msra.mxu0 0.0
        %291 = vmatprep.subr.mxu0 0.0
        %292 = vmatpush2.msra.mxu0 0.0
        %293 = vmatprep.subr.mxu0 0.0
        %294 = vmatpush2.msra.mxu0 0.0
        %295 = vmatprep.subr.mxu0 0.0
        %296 = vmatpush2.msra.mxu0 0.0
        %297 = vmatprep.subr.mxu0 0.0
        %298 = vmatpush2.msra.mxu0 0.0
        %299 = vmatprep.subr.mxu0 0.0
        %300 = vmatpush2.msra.mxu0 0.0
        %301 = vmatprep.subr.mxu0 0.0
        %302 = vmatpush2.msra.mxu0 0.0
        %303 = vmatprep.subr.mxu0 0.0
        %304 = vmatpush2.msra.mxu0 0.0
        %305 = vmatprep.subr.mxu0 0.0
        %306 = vmatpush2.msra.mxu0 0.0
        %307 = vmatprep.subr.mxu0 0.0
        %308 = vmatpush2.msra.mxu0 0.0
        %309 = vmatprep.subr.mxu0 0.0
        %310 = vmatpush2.msra.mxu0 0.0
        %311 = vmatprep.subr.mxu0 0.0
        %312 = vmatpush2.msra.mxu0 0.0
        %313 = vmatprep.mubr.f32.mxu0 0.0
        %314 = vmatmul.mubr.f32.gmra.mxu0 %v242
        %v315 = vpop.f32.mrf.mxu0
        %v316 = vadd.f32 0.0, %v315
        %v317 = vpop.f32.mrf.mxu0
        %v318 = vadd.f32 0.0, %v317
        %319 = vdwg.mxu0
        %v321 = vsel %vm240, %v226, 0
        %v324 = vsel %vm244, %v224, 0
        %v327 = vsel %vm244, %v225, 0
        %329 = vmatprep.subr.mxu0 0.0
        %330 = vmatpush1.msra.mxu0 0.0
        %331 = vmatprep.subr.mxu0 0.0
        %332 = vmatpush1.msra.mxu0 0.0
        %333 = vmatprep.subr.mxu0 0.0
        %334 = vmatpush1.msra.mxu0 0.0
        %335 = vmatprep.subr.mxu0 0.0
        %336 = vmatpush1.msra.mxu0 0.0
        %337 = vmatprep.subr.mxu0 0.0
        %338 = vmatpush1.msra.mxu0 0.0
        %339 = vmatprep.subr.mxu0 0.0
        %340 = vmatpush1.msra.mxu0 0.0
        %341 = vmatprep.subr.mxu0 0.0
        %342 = vmatpush1.msra.mxu0 0.0
        %343 = vmatprep.subr.mxu0 0.0
        %344 = vmatpush1.msra.mxu0 0.0
        %345 = vmatprep.subr.mxu0 0.0
        %346 = vmatpush1.msra.mxu0 0.0
        %347 = vmatprep.subr.mxu0 0.0
        %348 = vmatpush1.msra.mxu0 0.0
        %349 = vmatprep.subr.mxu0 0.0
        %350 = vmatpush1.msra.mxu0 0.0
        %351 = vmatprep.subr.mxu0 0.0
        %352 = vmatpush1.msra.mxu0 0.0
        %353 = vmatprep.subr.mxu0 0.0
        %354 = vmatpush1.msra.mxu0 0.0
        %355 = vmatprep.subr.mxu0 0.0
        %356 = vmatpush1.msra.mxu0 0.0
        %357 = vmatprep.subr.mxu0 0.0
        %358 = vmatpush1.msra.mxu0 0.0
        %359 = vmatprep.subr.mxu0 %v327
        %360 = vmatpush1.msra.mxu0 %v324
        %361 = vmatprep.subr.mxu0 0.0
        %362 = vmatpush2.msra.mxu0 0.0
        %363 = vmatprep.subr.mxu0 0.0
        %364 = vmatpush2.msra.mxu0 0.0
        %365 = vmatprep.subr.mxu0 0.0
        %366 = vmatpush2.msra.mxu0 0.0
        %367 = vmatprep.subr.mxu0 0.0
        %368 = vmatpush2.msra.mxu0 0.0
        %369 = vmatprep.subr.mxu0 0.0
        %370 = vmatpush2.msra.mxu0 0.0
        %371 = vmatprep.subr.mxu0 0.0
        %372 = vmatpush2.msra.mxu0 0.0
        %373 = vmatprep.subr.mxu0 0.0
        %374 = vmatpush2.msra.mxu0 0.0
        %375 = vmatprep.subr.mxu0 0.0
        %376 = vmatpush2.msra.mxu0 0.0
        %377 = vmatprep.subr.mxu0 0.0
        %378 = vmatpush2.msra.mxu0 0.0
        %379 = vmatprep.subr.mxu0 0.0
        %380 = vmatpush2.msra.mxu0 0.0
        %381 = vmatprep.subr.mxu0 0.0
        %382 = vmatpush2.msra.mxu0 0.0
        %383 = vmatprep.subr.mxu0 0.0
        %384 = vmatpush2.msra.mxu0 0.0
        %385 = vmatprep.subr.mxu0 0.0
        %386 = vmatpush2.msra.mxu0 0.0
        %387 = vmatprep.subr.mxu0 0.0
        %388 = vmatpush2.msra.mxu0 0.0
        %389 = vmatprep.subr.mxu0 0.0
        %390 = vmatpush2.msra.mxu0 0.0
        %391 = vmatprep.subr.mxu0 0.0
        %392 = vmatpush2.msra.mxu0 0.0
        %393 = vmatprep.mubr.f32.mxu0 0.0
        %394 = vmatmul.mubr.f32.gmra.mxu0 %v321
        %v395 = vpop.f32.mrf.mxu0
        %v396 = vadd.f32 %v316, %v395
        %v397 = vpop.f32.mrf.mxu0
        %v398 = vadd.f32 %v318, %v397
        %399 = vdwg.mxu0
        %v401 = vlaneseq
        %v402 = vshrl.u32 %v401, 7
        %v403 = vsub.s32 0, %v402
        %v404 = vrot.slane %v212, %v403
        %v405 = vlaneseq
        %v406 = vshrl.u32 %v405, 7
        %v407 = vsub.s32 1, %v406
        %v408 = vrot.slane %v212, %v407
        %409 = vrot.lane.b32.xlu0 %v404, 2
        %v410 = vpop.permute.xlu0 %409
        %411 = vrot.lane.b32.xlu0 %v408, 2
        %v412 = vpop.permute.xlu0 %411
        %vm413 = vcmask 15360
        %v414 = vsel %vm413, %v410, %v412
        %v418 = vmul.f32 %v208, %v410
        %v419 = vmul.f32 %v204, %v414
        %v420 = vmul.f32 %v209, %v412
        %s421 = scalar_lea.vmem %s1, 16
        %v422 = vld [vmem:[%s421] sm:$0xff]
        %426 = vrot.lane.b32.xlu0 %v418, 126
        %v427 = vpop.permute.xlu0 %426
        %428 = vrot.lane.b32.xlu0 %v419, 126
        %v429 = vpop.permute.xlu0 %428
        %430 = vrot.lane.b32.xlu0 %v420, 126
        %v431 = vpop.permute.xlu0 %430
        %vm432 = vcmask 1031168
        %v433 = vsel %vm432, %v427, %v429
        %v434 = vsel %vm432, %v429, %v431
        %v436 = vsel %vm240, %v422, 0
        %v438 = vsel %vm244, %v433, 0
        %v440 = vsel %vm244, %v434, 0
        %442 = vmatprep.subr.mxu0 0.0
        %443 = vmatpush1.msra.mxu0 0.0
        %444 = vmatprep.subr.mxu0 0.0
        %445 = vmatpush1.msra.mxu0 0.0
        %446 = vmatprep.subr.mxu0 0.0
        %447 = vmatpush1.msra.mxu0 0.0
        %448 = vmatprep.subr.mxu0 0.0
        %449 = vmatpush1.msra.mxu0 0.0
        %450 = vmatprep.subr.mxu0 0.0
        %451 = vmatpush1.msra.mxu0 0.0
        %452 = vmatprep.subr.mxu0 0.0
        %453 = vmatpush1.msra.mxu0 0.0
        %454 = vmatprep.subr.mxu0 0.0
        %455 = vmatpush1.msra.mxu0 0.0
        %456 = vmatprep.subr.mxu0 0.0
        %457 = vmatpush1.msra.mxu0 0.0
        %458 = vmatprep.subr.mxu0 0.0
        %459 = vmatpush1.msra.mxu0 0.0
        %460 = vmatprep.subr.mxu0 0.0
        %461 = vmatpush1.msra.mxu0 0.0
        %462 = vmatprep.subr.mxu0 0.0
        %463 = vmatpush1.msra.mxu0 0.0
        %464 = vmatprep.subr.mxu0 0.0
        %465 = vmatpush1.msra.mxu0 0.0
        %466 = vmatprep.subr.mxu0 0.0
        %467 = vmatpush1.msra.mxu0 0.0
        %468 = vmatprep.subr.mxu0 0.0
        %469 = vmatpush1.msra.mxu0 0.0
        %470 = vmatprep.subr.mxu0 0.0
        %471 = vmatpush1.msra.mxu0 0.0
        %472 = vmatprep.subr.mxu0 %v440
        %473 = vmatpush1.msra.mxu0 %v438
        %474 = vmatprep.subr.mxu0 0.0
        %475 = vmatpush2.msra.mxu0 0.0
        %476 = vmatprep.subr.mxu0 0.0
        %477 = vmatpush2.msra.mxu0 0.0
        %478 = vmatprep.subr.mxu0 0.0
        %479 = vmatpush2.msra.mxu0 0.0
        %480 = vmatprep.subr.mxu0 0.0
        %481 = vmatpush2.msra.mxu0 0.0
        %482 = vmatprep.subr.mxu0 0.0
        %483 = vmatpush2.msra.mxu0 0.0
        %484 = vmatprep.subr.mxu0 0.0
        %485 = vmatpush2.msra.mxu0 0.0
        %486 = vmatprep.subr.mxu0 0.0
        %487 = vmatpush2.msra.mxu0 0.0
        %488 = vmatprep.subr.mxu0 0.0
        %489 = vmatpush2.msra.mxu0 0.0
        %490 = vmatprep.subr.mxu0 0.0
        %491 = vmatpush2.msra.mxu0 0.0
        %492 = vmatprep.subr.mxu0 0.0
        %493 = vmatpush2.msra.mxu0 0.0
        %494 = vmatprep.subr.mxu0 0.0
        %495 = vmatpush2.msra.mxu0 0.0
        %496 = vmatprep.subr.mxu0 0.0
        %497 = vmatpush2.msra.mxu0 0.0
        %498 = vmatprep.subr.mxu0 0.0
        %499 = vmatpush2.msra.mxu0 0.0
        %500 = vmatprep.subr.mxu0 0.0
        %501 = vmatpush2.msra.mxu0 0.0
        %502 = vmatprep.subr.mxu0 0.0
        %503 = vmatpush2.msra.mxu0 0.0
        %504 = vmatprep.subr.mxu0 0.0
        %505 = vmatpush2.msra.mxu0 0.0
        %506 = vmatprep.mubr.f32.mxu0 0.0
        %507 = vmatmul.mubr.f32.gmra.mxu0 %v436
        %v508 = vpop.f32.mrf.mxu0
        %v509 = vadd.f32 0.0, %v508
        %v510 = vpop.f32.mrf.mxu0
        %v511 = vadd.f32 0.0, %v510
        %512 = vdwg.mxu0
        %v513 = vadd.f32 %v396, %v509
        %v514 = vadd.f32 %v398, %v511
        %515 = vrot.lane.b32.xlu0 %v217, 16
        %v516 = vpop.permute.xlu0 %515
        %517 = vrot.lane.b32.xlu0 %v221, 16
        %v518 = vpop.permute.xlu0 %517
        %vm519 = vcmask 130048
        %v520 = vsel %vm519, %v516, %v518
        %v524 = vmul.f32 %v208, %v516
        %v525 = vmul.f32 %v204, %v520
        %v526 = vmul.f32 %v209, %v518
        %s527 = scalar_lea.vmem %s1, 24
        %v528 = vld [vmem:[%s527] sm:$0xff]
        %532 = vrot.lane.b32.xlu0 %v524, 112
        %v533 = vpop.permute.xlu0 %532
        %534 = vrot.lane.b32.xlu0 %v525, 112
        %v535 = vpop.permute.xlu0 %534
        %536 = vrot.lane.b32.xlu0 %v526, 112
        %v537 = vpop.permute.xlu0 %536
        %vm538 = vcmask 916480
        %v539 = vsel %vm538, %v533, %v535
        %v540 = vsel %vm538, %v535, %v537
        %v542 = vsel %vm240, %v528, 0
        %v544 = vsel %vm244, %v539, 0
        %v546 = vsel %vm244, %v540, 0
        %548 = vmatprep.subr.mxu0 0.0
        %549 = vmatpush1.msra.mxu0 0.0
        %550 = vmatprep.subr.mxu0 0.0
        %551 = vmatpush1.msra.mxu0 0.0
        %552 = vmatprep.subr.mxu0 0.0
        %553 = vmatpush1.msra.mxu0 0.0
        %554 = vmatprep.subr.mxu0 0.0
        %555 = vmatpush1.msra.mxu0 0.0
        %556 = vmatprep.subr.mxu0 0.0
        %557 = vmatpush1.msra.mxu0 0.0
        %558 = vmatprep.subr.mxu0 0.0
        %559 = vmatpush1.msra.mxu0 0.0
        %560 = vmatprep.subr.mxu0 0.0
        %561 = vmatpush1.msra.mxu0 0.0
        %562 = vmatprep.subr.mxu0 0.0
        %563 = vmatpush1.msra.mxu0 0.0
        %564 = vmatprep.subr.mxu0 0.0
        %565 = vmatpush1.msra.mxu0 0.0
        %566 = vmatprep.subr.mxu0 0.0
        %567 = vmatpush1.msra.mxu0 0.0
        %568 = vmatprep.subr.mxu0 0.0
        %569 = vmatpush1.msra.mxu0 0.0
        %570 = vmatprep.subr.mxu0 0.0
        %571 = vmatpush1.msra.mxu0 0.0
        %572 = vmatprep.subr.mxu0 0.0
        %573 = vmatpush1.msra.mxu0 0.0
        %574 = vmatprep.subr.mxu0 0.0
        %575 = vmatpush1.msra.mxu0 0.0
        %576 = vmatprep.subr.mxu0 0.0
        %577 = vmatpush1.msra.mxu0 0.0
        %578 = vmatprep.subr.mxu0 %v546
        %579 = vmatpush1.msra.mxu0 %v544
        %580 = vmatprep.subr.mxu0 0.0
        %581 = vmatpush2.msra.mxu0 0.0
        %582 = vmatprep.subr.mxu0 0.0
        %583 = vmatpush2.msra.mxu0 0.0
        %584 = vmatprep.subr.mxu0 0.0
        %585 = vmatpush2.msra.mxu0 0.0
        %586 = vmatprep.subr.mxu0 0.0
        %587 = vmatpush2.msra.mxu0 0.0
        %588 = vmatprep.subr.mxu0 0.0
        %589 = vmatpush2.msra.mxu0 0.0
        %590 = vmatprep.subr.mxu0 0.0
        %591 = vmatpush2.msra.mxu0 0.0
        %592 = vmatprep.subr.mxu0 0.0
        %593 = vmatpush2.msra.mxu0 0.0
        %594 = vmatprep.subr.mxu0 0.0
        %595 = vmatpush2.msra.mxu0 0.0
        %596 = vmatprep.subr.mxu0 0.0
        %597 = vmatpush2.msra.mxu0 0.0
        %598 = vmatprep.subr.mxu0 0.0
        %599 = vmatpush2.msra.mxu0 0.0
        %600 = vmatprep.subr.mxu0 0.0
        %601 = vmatpush2.msra.mxu0 0.0
        %602 = vmatprep.subr.mxu0 0.0
        %603 = vmatpush2.msra.mxu0 0.0
        %604 = vmatprep.subr.mxu0 0.0
        %605 = vmatpush2.msra.mxu0 0.0
        %606 = vmatprep.subr.mxu0 0.0
        %607 = vmatpush2.msra.mxu0 0.0
        %608 = vmatprep.subr.mxu0 0.0
        %609 = vmatpush2.msra.mxu0 0.0
        %610 = vmatprep.subr.mxu0 0.0
        %611 = vmatpush2.msra.mxu0 0.0
        %612 = vmatprep.mubr.f32.mxu0 0.0
        %613 = vmatmul.mubr.f32.gmra.mxu0 %v542
        %v614 = vpop.f32.mrf.mxu0
        %v615 = vadd.f32 0.0, %v614
        %v616 = vpop.f32.mrf.mxu0
        %v617 = vadd.f32 0.0, %v616
        %618 = vdwg.mxu0
        %v619 = vadd.f32 %v513, %v615
        %v620 = vadd.f32 %v514, %v617
        %s621 = scalar_lea.vmem %s1, 32
        %v622 = vld [vmem:[%s621] sm:$0xff]
        %623 = vrot.lane.b32.xlu0 %v208, 111
        %v624 = vpop.permute.xlu0 %623
        %625 = vrot.lane.b32.xlu0 %v204, 111
        %v626 = vpop.permute.xlu0 %625
        %627 = vrot.lane.b32.xlu0 %v209, 111
        %v628 = vpop.permute.xlu0 %627
        %vm629 = vcmask 908288
        %v630 = vsel %vm629, %v624, %v626
        %v631 = vsel %vm629, %v626, %v628
        %v633 = vsel %vm240, %v622, 0
        %v635 = vsel %vm244, %v630, 0
        %v637 = vsel %vm244, %v631, 0
        %639 = vmatprep.subr.mxu0 0.0
        %640 = vmatpush1.msra.mxu0 0.0
        %641 = vmatprep.subr.mxu0 0.0
        %642 = vmatpush1.msra.mxu0 0.0
        %643 = vmatprep.subr.mxu0 0.0
        %644 = vmatpush1.msra.mxu0 0.0
        %645 = vmatprep.subr.mxu0 0.0
        %646 = vmatpush1.msra.mxu0 0.0
        %647 = vmatprep.subr.mxu0 0.0
        %648 = vmatpush1.msra.mxu0 0.0
        %649 = vmatprep.subr.mxu0 0.0
        %650 = vmatpush1.msra.mxu0 0.0
        %651 = vmatprep.subr.mxu0 0.0
        %652 = vmatpush1.msra.mxu0 0.0
        %653 = vmatprep.subr.mxu0 0.0
        %654 = vmatpush1.msra.mxu0 0.0
        %655 = vmatprep.subr.mxu0 0.0
        %656 = vmatpush1.msra.mxu0 0.0
        %657 = vmatprep.subr.mxu0 0.0
        %658 = vmatpush1.msra.mxu0 0.0
        %659 = vmatprep.subr.mxu0 0.0
        %660 = vmatpush1.msra.mxu0 0.0
        %661 = vmatprep.subr.mxu0 0.0
        %662 = vmatpush1.msra.mxu0 0.0
        %663 = vmatprep.subr.mxu0 0.0
        %664 = vmatpush1.msra.mxu0 0.0
        %665 = vmatprep.subr.mxu0 0.0
        %666 = vmatpush1.msra.mxu0 0.0
        %667 = vmatprep.subr.mxu0 0.0
        %668 = vmatpush1.msra.mxu0 0.0
        %669 = vmatprep.subr.mxu0 %v637
        %670 = vmatpush1.msra.mxu0 %v635
        %671 = vmatprep.subr.mxu0 0.0
        %672 = vmatpush2.msra.mxu0 0.0
        %673 = vmatprep.subr.mxu0 0.0
        %674 = vmatpush2.msra.mxu0 0.0
        %675 = vmatprep.subr.mxu0 0.0
        %676 = vmatpush2.msra.mxu0 0.0
        %677 = vmatprep.subr.mxu0 0.0
        %678 = vmatpush2.msra.mxu0 0.0
        %679 = vmatprep.subr.mxu0 0.0
        %680 = vmatpush2.msra.mxu0 0.0
        %681 = vmatprep.subr.mxu0 0.0
        %682 = vmatpush2.msra.mxu0 0.0
        %683 = vmatprep.subr.mxu0 0.0
        %684 = vmatpush2.msra.mxu0 0.0
        %685 = vmatprep.subr.mxu0 0.0
        %686 = vmatpush2.msra.mxu0 0.0
        %687 = vmatprep.subr.mxu0 0.0
        %688 = vmatpush2.msra.mxu0 0.0
        %689 = vmatprep.subr.mxu0 0.0
        %690 = vmatpush2.msra.mxu0 0.0
        %691 = vmatprep.subr.mxu0 0.0
        %692 = vmatpush2.msra.mxu0 0.0
        %693 = vmatprep.subr.mxu0 0.0
        %694 = vmatpush2.msra.mxu0 0.0
        %695 = vmatprep.subr.mxu0 0.0
        %696 = vmatpush2.msra.mxu0 0.0
        %697 = vmatprep.subr.mxu0 0.0
        %698 = vmatpush2.msra.mxu0 0.0
        %699 = vmatprep.subr.mxu0 0.0
        %700 = vmatpush2.msra.mxu0 0.0
        %701 = vmatprep.subr.mxu0 0.0
        %702 = vmatpush2.msra.mxu0 0.0
        %703 = vmatprep.mubr.f32.mxu0 0.0
        %704 = vmatmul.mubr.f32.gmra.mxu0 %v633
        %v705 = vpop.f32.mrf.mxu0
        %v706 = vadd.f32 0.0, %v705
        %v707 = vpop.f32.mrf.mxu0
        %v708 = vadd.f32 0.0, %v707
        %709 = vdwg.mxu0
        %v710 = vadd.f32 %v619, %v706
        %v711 = vadd.f32 %v620, %v708
        %712 = vrot.lane.b32.xlu0 %v404, 18
        %v713 = vpop.permute.xlu0 %712
        %714 = vrot.lane.b32.xlu0 %v408, 18
        %v715 = vpop.permute.xlu0 %714
        %vm716 = vcmask 146432
        %v717 = vsel %vm716, %v713, %v715
        %v721 = vmul.f32 %v208, %v713
        %v722 = vmul.f32 %v204, %v717
        %v723 = vmul.f32 %v209, %v715
        %s724 = scalar_lea.vmem %s1, 40
        %v725 = vld [vmem:[%s724] sm:$0xff]
        %729 = vrot.lane.b32.xlu0 %v721, 110
        %v730 = vpop.permute.xlu0 %729
        %731 = vrot.lane.b32.xlu0 %v722, 110
        %v732 = vpop.permute.xlu0 %731
        %733 = vrot.lane.b32.xlu0 %v723, 110
        %v734 = vpop.permute.xlu0 %733
        %vm735 = vcmask 900096
        %v736 = vsel %vm735, %v730, %v732
        %v737 = vsel %vm735, %v732, %v734
        %v739 = vsel %vm240, %v725, 0
        %v741 = vsel %vm244, %v736, 0
        %v743 = vsel %vm244, %v737, 0
        %745 = vmatprep.subr.mxu0 0.0
        %746 = vmatpush1.msra.mxu0 0.0
        %747 = vmatprep.subr.mxu0 0.0
        %748 = vmatpush1.msra.mxu0 0.0
        %749 = vmatprep.subr.mxu0 0.0
        %750 = vmatpush1.msra.mxu0 0.0
        %751 = vmatprep.subr.mxu0 0.0
        %752 = vmatpush1.msra.mxu0 0.0
        %753 = vmatprep.subr.mxu0 0.0
        %754 = vmatpush1.msra.mxu0 0.0
        %755 = vmatprep.subr.mxu0 0.0
        %756 = vmatpush1.msra.mxu0 0.0
        %757 = vmatprep.subr.mxu0 0.0
        %758 = vmatpush1.msra.mxu0 0.0
        %759 = vmatprep.subr.mxu0 0.0
        %760 = vmatpush1.msra.mxu0 0.0
        %761 = vmatprep.subr.mxu0 0.0
        %762 = vmatpush1.msra.mxu0 0.0
        %763 = vmatprep.subr.mxu0 0.0
        %764 = vmatpush1.msra.mxu0 0.0
        %765 = vmatprep.subr.mxu0 0.0
        %766 = vmatpush1.msra.mxu0 0.0
        %767 = vmatprep.subr.mxu0 0.0
        %768 = vmatpush1.msra.mxu0 0.0
        %769 = vmatprep.subr.mxu0 0.0
        %770 = vmatpush1.msra.mxu0 0.0
        %771 = vmatprep.subr.mxu0 0.0
        %772 = vmatpush1.msra.mxu0 0.0
        %773 = vmatprep.subr.mxu0 0.0
        %774 = vmatpush1.msra.mxu0 0.0
        %775 = vmatprep.subr.mxu0 %v743
        %776 = vmatpush1.msra.mxu0 %v741
        %777 = vmatprep.subr.mxu0 0.0
        %778 = vmatpush2.msra.mxu0 0.0
        %779 = vmatprep.subr.mxu0 0.0
        %780 = vmatpush2.msra.mxu0 0.0
        %781 = vmatprep.subr.mxu0 0.0
        %782 = vmatpush2.msra.mxu0 0.0
        %783 = vmatprep.subr.mxu0 0.0
        %784 = vmatpush2.msra.mxu0 0.0
        %785 = vmatprep.subr.mxu0 0.0
        %786 = vmatpush2.msra.mxu0 0.0
        %787 = vmatprep.subr.mxu0 0.0
        %788 = vmatpush2.msra.mxu0 0.0
        %789 = vmatprep.subr.mxu0 0.0
        %790 = vmatpush2.msra.mxu0 0.0
        %791 = vmatprep.subr.mxu0 0.0
        %792 = vmatpush2.msra.mxu0 0.0
        %793 = vmatprep.subr.mxu0 0.0
        %794 = vmatpush2.msra.mxu0 0.0
        %795 = vmatprep.subr.mxu0 0.0
        %796 = vmatpush2.msra.mxu0 0.0
        %797 = vmatprep.subr.mxu0 0.0
        %798 = vmatpush2.msra.mxu0 0.0
        %799 = vmatprep.subr.mxu0 0.0
        %800 = vmatpush2.msra.mxu0 0.0
        %801 = vmatprep.subr.mxu0 0.0
        %802 = vmatpush2.msra.mxu0 0.0
        %803 = vmatprep.subr.mxu0 0.0
        %804 = vmatpush2.msra.mxu0 0.0
        %805 = vmatprep.subr.mxu0 0.0
        %806 = vmatpush2.msra.mxu0 0.0
        %807 = vmatprep.subr.mxu0 0.0
        %808 = vmatpush2.msra.mxu0 0.0
        %809 = vmatprep.mubr.f32.mxu0 0.0
        %810 = vmatmul.mubr.f32.gmra.mxu0 %v739
        %v811 = vpop.f32.mrf.mxu0
        %v812 = vadd.f32 0.0, %v811
        %v813 = vpop.f32.mrf.mxu0
        %v814 = vadd.f32 0.0, %v813
        %815 = vdwg.mxu0
        %v816 = vadd.f32 %v710, %v812
        %v817 = vadd.f32 %v711, %v814
        %818 = vrot.lane.b32.xlu0 %v217, 32
        %v819 = vpop.permute.xlu0 %818
        %820 = vrot.lane.b32.xlu0 %v221, 32
        %v821 = vpop.permute.xlu0 %820
        %vm822 = vcmask 261120
        %v823 = vsel %vm822, %v819, %v821
        %v827 = vmul.f32 %v208, %v819
        %v828 = vmul.f32 %v204, %v823
        %v829 = vmul.f32 %v209, %v821
        %s830 = scalar_lea.vmem %s1, 48
        %v831 = vld [vmem:[%s830] sm:$0xff]
        %835 = vrot.lane.b32.xlu0 %v827, 96
        %v836 = vpop.permute.xlu0 %835
        %837 = vrot.lane.b32.xlu0 %v828, 96
        %v838 = vpop.permute.xlu0 %837
        %839 = vrot.lane.b32.xlu0 %v829, 96
        %v840 = vpop.permute.xlu0 %839
        %vm841 = vcmask 785408
        %v842 = vsel %vm841, %v836, %v838
        %v843 = vsel %vm841, %v838, %v840
        %v845 = vsel %vm240, %v831, 0
        %v847 = vsel %vm244, %v842, 0
        %v849 = vsel %vm244, %v843, 0
        %851 = vmatprep.subr.mxu0 0.0
        %852 = vmatpush1.msra.mxu0 0.0
        %853 = vmatprep.subr.mxu0 0.0
        %854 = vmatpush1.msra.mxu0 0.0
        %855 = vmatprep.subr.mxu0 0.0
        %856 = vmatpush1.msra.mxu0 0.0
        %857 = vmatprep.subr.mxu0 0.0
        %858 = vmatpush1.msra.mxu0 0.0
        %859 = vmatprep.subr.mxu0 0.0
        %860 = vmatpush1.msra.mxu0 0.0
        %861 = vmatprep.subr.mxu0 0.0
        %862 = vmatpush1.msra.mxu0 0.0
        %863 = vmatprep.subr.mxu0 0.0
        %864 = vmatpush1.msra.mxu0 0.0
        %865 = vmatprep.subr.mxu0 0.0
        %866 = vmatpush1.msra.mxu0 0.0
        %867 = vmatprep.subr.mxu0 0.0
        %868 = vmatpush1.msra.mxu0 0.0
        %869 = vmatprep.subr.mxu0 0.0
        %870 = vmatpush1.msra.mxu0 0.0
        %871 = vmatprep.subr.mxu0 0.0
        %872 = vmatpush1.msra.mxu0 0.0
        %873 = vmatprep.subr.mxu0 0.0
        %874 = vmatpush1.msra.mxu0 0.0
        %875 = vmatprep.subr.mxu0 0.0
        %876 = vmatpush1.msra.mxu0 0.0
        %877 = vmatprep.subr.mxu0 0.0
        %878 = vmatpush1.msra.mxu0 0.0
        %879 = vmatprep.subr.mxu0 0.0
        %880 = vmatpush1.msra.mxu0 0.0
        %881 = vmatprep.subr.mxu0 %v849
        %882 = vmatpush1.msra.mxu0 %v847
        %883 = vmatprep.subr.mxu0 0.0
        %884 = vmatpush2.msra.mxu0 0.0
        %885 = vmatprep.subr.mxu0 0.0
        %886 = vmatpush2.msra.mxu0 0.0
        %887 = vmatprep.subr.mxu0 0.0
        %888 = vmatpush2.msra.mxu0 0.0
        %889 = vmatprep.subr.mxu0 0.0
        %890 = vmatpush2.msra.mxu0 0.0
        %891 = vmatprep.subr.mxu0 0.0
        %892 = vmatpush2.msra.mxu0 0.0
        %893 = vmatprep.subr.mxu0 0.0
        %894 = vmatpush2.msra.mxu0 0.0
        %895 = vmatprep.subr.mxu0 0.0
        %896 = vmatpush2.msra.mxu0 0.0
        %897 = vmatprep.subr.mxu0 0.0
        %898 = vmatpush2.msra.mxu0 0.0
        %899 = vmatprep.subr.mxu0 0.0
        %900 = vmatpush2.msra.mxu0 0.0
        %901 = vmatprep.subr.mxu0 0.0
        %902 = vmatpush2.msra.mxu0 0.0
        %903 = vmatprep.subr.mxu0 0.0
        %904 = vmatpush2.msra.mxu0 0.0
        %905 = vmatprep.subr.mxu0 0.0
        %906 = vmatpush2.msra.mxu0 0.0
        %907 = vmatprep.subr.mxu0 0.0
        %908 = vmatpush2.msra.mxu0 0.0
        %909 = vmatprep.subr.mxu0 0.0
        %910 = vmatpush2.msra.mxu0 0.0
        %911 = vmatprep.subr.mxu0 0.0
        %912 = vmatpush2.msra.mxu0 0.0
        %913 = vmatprep.subr.mxu0 0.0
        %914 = vmatpush2.msra.mxu0 0.0
        %915 = vmatprep.mubr.f32.mxu0 0.0
        %916 = vmatmul.mubr.f32.gmra.mxu0 %v845
        %v917 = vpop.f32.mrf.mxu0
        %v918 = vadd.f32 0.0, %v917
        %v919 = vpop.f32.mrf.mxu0
        %v920 = vadd.f32 0.0, %v919
        %921 = vdwg.mxu0
        %v922 = vadd.f32 %v816, %v918
        %v923 = vadd.f32 %v817, %v920
        %s924 = scalar_lea.vmem %s1, 56
        %v925 = vld [vmem:[%s924] sm:$0xff]
        %926 = vrot.lane.b32.xlu0 %v208, 95
        %v927 = vpop.permute.xlu0 %926
        %928 = vrot.lane.b32.xlu0 %v204, 95
        %v929 = vpop.permute.xlu0 %928
        %930 = vrot.lane.b32.xlu0 %v209, 95
        %v931 = vpop.permute.xlu0 %930
        %vm932 = vcmask 777216
        %v933 = vsel %vm932, %v927, %v929
        %v934 = vsel %vm932, %v929, %v931
        %v936 = vsel %vm240, %v925, 0
        %v938 = vsel %vm244, %v933, 0
        %v940 = vsel %vm244, %v934, 0
        %942 = vmatprep.subr.mxu0 0.0
        %943 = vmatpush1.msra.mxu0 0.0
        %944 = vmatprep.subr.mxu0 0.0
        %945 = vmatpush1.msra.mxu0 0.0
        %946 = vmatprep.subr.mxu0 0.0
        %947 = vmatpush1.msra.mxu0 0.0
        %948 = vmatprep.subr.mxu0 0.0
        %949 = vmatpush1.msra.mxu0 0.0
        %950 = vmatprep.subr.mxu0 0.0
        %951 = vmatpush1.msra.mxu0 0.0
        %952 = vmatprep.subr.mxu0 0.0
        %953 = vmatpush1.msra.mxu0 0.0
        %954 = vmatprep.subr.mxu0 0.0
        %955 = vmatpush1.msra.mxu0 0.0
        %956 = vmatprep.subr.mxu0 0.0
        %957 = vmatpush1.msra.mxu0 0.0
        %958 = vmatprep.subr.mxu0 0.0
        %959 = vmatpush1.msra.mxu0 0.0
        %960 = vmatprep.subr.mxu0 0.0
        %961 = vmatpush1.msra.mxu0 0.0
        %962 = vmatprep.subr.mxu0 0.0
        %963 = vmatpush1.msra.mxu0 0.0
        %964 = vmatprep.subr.mxu0 0.0
        %965 = vmatpush1.msra.mxu0 0.0
        %966 = vmatprep.subr.mxu0 0.0
        %967 = vmatpush1.msra.mxu0 0.0
        %968 = vmatprep.subr.mxu0 0.0
        %969 = vmatpush1.msra.mxu0 0.0
        %970 = vmatprep.subr.mxu0 0.0
        %971 = vmatpush1.msra.mxu0 0.0
        %972 = vmatprep.subr.mxu0 %v940
        %973 = vmatpush1.msra.mxu0 %v938
        %974 = vmatprep.subr.mxu0 0.0
        %975 = vmatpush2.msra.mxu0 0.0
        %976 = vmatprep.subr.mxu0 0.0
        %977 = vmatpush2.msra.mxu0 0.0
        %978 = vmatprep.subr.mxu0 0.0
        %979 = vmatpush2.msra.mxu0 0.0
        %980 = vmatprep.subr.mxu0 0.0
        %981 = vmatpush2.msra.mxu0 0.0
        %982 = vmatprep.subr.mxu0 0.0
        %983 = vmatpush2.msra.mxu0 0.0
        %984 = vmatprep.subr.mxu0 0.0
        %985 = vmatpush2.msra.mxu0 0.0
        %986 = vmatprep.subr.mxu0 0.0
        %987 = vmatpush2.msra.mxu0 0.0
        %988 = vmatprep.subr.mxu0 0.0
        %989 = vmatpush2.msra.mxu0 0.0
        %990 = vmatprep.subr.mxu0 0.0
        %991 = vmatpush2.msra.mxu0 0.0
        %992 = vmatprep.subr.mxu0 0.0
        %993 = vmatpush2.msra.mxu0 0.0
        %994 = vmatprep.subr.mxu0 0.0
        %995 = vmatpush2.msra.mxu0 0.0
        %996 = vmatprep.subr.mxu0 0.0
        %997 = vmatpush2.msra.mxu0 0.0
        %998 = vmatprep.subr.mxu0 0.0
        %999 = vmatpush2.msra.mxu0 0.0
        %1000 = vmatprep.subr.mxu0 0.0
        %1001 = vmatpush2.msra.mxu0 0.0
        %1002 = vmatprep.subr.mxu0 0.0
        %1003 = vmatpush2.msra.mxu0 0.0
        %1004 = vmatprep.subr.mxu0 0.0
        %1005 = vmatpush2.msra.mxu0 0.0
        %1006 = vmatprep.mubr.f32.mxu0 0.0
        %1007 = vmatmul.mubr.f32.gmra.mxu0 %v936
        %v1008 = vpop.f32.mrf.mxu0
        %v1009 = vadd.f32 0.0, %v1008
        %v1010 = vpop.f32.mrf.mxu0
        %v1011 = vadd.f32 0.0, %v1010
        %1012 = vdwg.mxu0
        %v1013 = vadd.f32 %v922, %v1009
        %v1014 = vadd.f32 %v923, %v1011
        %1015 = vrot.lane.b32.xlu0 %v404, 34
        %v1016 = vpop.permute.xlu0 %1015
        %1017 = vrot.lane.b32.xlu0 %v408, 34
        %v1018 = vpop.permute.xlu0 %1017
        %vm1019 = vcmask 277504
        %v1020 = vsel %vm1019, %v1016, %v1018
        %v1024 = vmul.f32 %v208, %v1016
        %v1025 = vmul.f32 %v204, %v1020
        %v1026 = vmul.f32 %v209, %v1018
        %s1027 = scalar_lea.vmem %s1, 64
        %v1028 = vld [vmem:[%s1027] sm:$0xff]
        %1032 = vrot.lane.b32.xlu0 %v1024, 94
        %v1033 = vpop.permute.xlu0 %1032
        %1034 = vrot.lane.b32.xlu0 %v1025, 94
        %v1035 = vpop.permute.xlu0 %1034
        %1036 = vrot.lane.b32.xlu0 %v1026, 94
        %v1037 = vpop.permute.xlu0 %1036
        %vm1038 = vcmask 769024
        %v1039 = vsel %vm1038, %v1033, %v1035
        %v1040 = vsel %vm1038, %v1035, %v1037
        %v1042 = vsel %vm240, %v1028, 0
        %v1044 = vsel %vm244, %v1039, 0
        %v1046 = vsel %vm244, %v1040, 0
        %1048 = vmatprep.subr.mxu0 0.0
        %1049 = vmatpush1.msra.mxu0 0.0
        %1050 = vmatprep.subr.mxu0 0.0
        %1051 = vmatpush1.msra.mxu0 0.0
        %1052 = vmatprep.subr.mxu0 0.0
        %1053 = vmatpush1.msra.mxu0 0.0
        %1054 = vmatprep.subr.mxu0 0.0
        %1055 = vmatpush1.msra.mxu0 0.0
        %1056 = vmatprep.subr.mxu0 0.0
        %1057 = vmatpush1.msra.mxu0 0.0
        %1058 = vmatprep.subr.mxu0 0.0
        %1059 = vmatpush1.msra.mxu0 0.0
        %1060 = vmatprep.subr.mxu0 0.0
        %1061 = vmatpush1.msra.mxu0 0.0
        %1062 = vmatprep.subr.mxu0 0.0
        %1063 = vmatpush1.msra.mxu0 0.0
        %1064 = vmatprep.subr.mxu0 0.0
        %1065 = vmatpush1.msra.mxu0 0.0
        %1066 = vmatprep.subr.mxu0 0.0
        %1067 = vmatpush1.msra.mxu0 0.0
        %1068 = vmatprep.subr.mxu0 0.0
        %1069 = vmatpush1.msra.mxu0 0.0
        %1070 = vmatprep.subr.mxu0 0.0
        %1071 = vmatpush1.msra.mxu0 0.0
        %1072 = vmatprep.subr.mxu0 0.0
        %1073 = vmatpush1.msra.mxu0 0.0
        %1074 = vmatprep.subr.mxu0 0.0
        %1075 = vmatpush1.msra.mxu0 0.0
        %1076 = vmatprep.subr.mxu0 0.0
        %1077 = vmatpush1.msra.mxu0 0.0
        %1078 = vmatprep.subr.mxu0 %v1046
        %1079 = vmatpush1.msra.mxu0 %v1044
        %1080 = vmatprep.subr.mxu0 0.0
        %1081 = vmatpush2.msra.mxu0 0.0
        %1082 = vmatprep.subr.mxu0 0.0
        %1083 = vmatpush2.msra.mxu0 0.0
        %1084 = vmatprep.subr.mxu0 0.0
        %1085 = vmatpush2.msra.mxu0 0.0
        %1086 = vmatprep.subr.mxu0 0.0
        %1087 = vmatpush2.msra.mxu0 0.0
        %1088 = vmatprep.subr.mxu0 0.0
        %1089 = vmatpush2.msra.mxu0 0.0
        %1090 = vmatprep.subr.mxu0 0.0
        %1091 = vmatpush2.msra.mxu0 0.0
        %1092 = vmatprep.subr.mxu0 0.0
        %1093 = vmatpush2.msra.mxu0 0.0
        %1094 = vmatprep.subr.mxu0 0.0
        %1095 = vmatpush2.msra.mxu0 0.0
        %1096 = vmatprep.subr.mxu0 0.0
        %1097 = vmatpush2.msra.mxu0 0.0
        %1098 = vmatprep.subr.mxu0 0.0
        %1099 = vmatpush2.msra.mxu0 0.0
        %1100 = vmatprep.subr.mxu0 0.0
        %1101 = vmatpush2.msra.mxu0 0.0
        %1102 = vmatprep.subr.mxu0 0.0
        %1103 = vmatpush2.msra.mxu0 0.0
        %1104 = vmatprep.subr.mxu0 0.0
        %1105 = vmatpush2.msra.mxu0 0.0
        %1106 = vmatprep.subr.mxu0 0.0
        %1107 = vmatpush2.msra.mxu0 0.0
        %1108 = vmatprep.subr.mxu0 0.0
        %1109 = vmatpush2.msra.mxu0 0.0
        %1110 = vmatprep.subr.mxu0 0.0
        %1111 = vmatpush2.msra.mxu0 0.0
        %1112 = vmatprep.mubr.f32.mxu0 0.0
        %1113 = vmatmul.mubr.f32.gmra.mxu0 %v1042
        %v1114 = vpop.f32.mrf.mxu0
        %v1115 = vadd.f32 0.0, %v1114
        %v1116 = vpop.f32.mrf.mxu0
        %v1117 = vadd.f32 0.0, %v1116
        %1118 = vdwg.mxu0
        %v1119 = vadd.f32 %v1013, %v1115
        %v1120 = vadd.f32 %v1014, %v1117
        %v1121 = vld [vmem:[%s2] sm:$0xff]
        %1123 = vset.pattern.permute.xlu0 0
        %1124 = vperm.xlu0 %1123, %v1121
        %v1125 = vpop.permute.xlu0 %1124
        %v1127 = vadd.f32 %v1119, %v1125
        %v1128 = vadd.f32 %v1120, %v1125
        %v1129 = vmul.f32 %v1127, 0.2
        %v1130 = vmul.f32 %v1128, 0.2
        %v1131 = vmax.f32 %v1127, %v1129
        %v1132 = vmax.f32 %v1128, %v1130
        %1133 = vst [vmem:[%s190] sm:$0xff] %v1131
        %1134 = vst [vmem:[%s190 + $0x8] sm:$0xff] %v1132
        %s1135 = sand.u32 %s115, 1
        %s1136 = scalar_lea.sflag [#allocation3], %s1135
        %s1137 = sand.u32 %s115, 1
        %s1138 = smul.addr %s1137, 16
        %s1139 = scalar_lea.vmem [#allocation2], %s1138
        // Predicated region
        $region37: #{tpu_custom_call.1} parent=35 // pred_check
          %p1140 = pneg %p125
        $region38: #{tpu_custom_call.1} parent=35 // pred_check_branch
          %1142 = sbr.rel (%p1140) target = $region40
        $region39: #{tpu_custom_call.1} parent=35 // pred_region
          %s1144 = ssub.s32 256, 256
          %1145 = vsyncadd %s1136, %s1144
          %s1146 = smul.addr %s18, 2
          %s1147 = smul.addr %s1146, 128
          %s1148 = scalar_lea.hbm %s4, %s1147
          %s1150 = sshll.u32 %s1139, 4
          %s1151 = int_to_ptr.vmem [resolvable:$true] %s1150
          %1153 = dma.vmem_to_hbm [thread:$0]  %s1151, 256, %s1148, %s1136
        $region40: #{tpu_custom_call.1} parent=35 // pred_fallthru
          _
      $region36: #{tpu_custom_call.1} parent=5 // pred_fallthru
        _
      %p1154 = scmp.le.s32.totalorder 2, %s13
      // Predicated region
      $region41: #{tpu_custom_call.1} parent=5 // pred_check
        %p1155 = pneg %p1154
      $region42: #{tpu_custom_call.1} parent=5 // pred_check_branch
        %1157 = sbr.rel (%p1155) target = $region44
      $region43: #{tpu_custom_call.1} parent=5 // pred_region
        %s1158 = ssub.s32 %s13, 2
        // Predicated region
        $region45: #{tpu_custom_call.1} parent=43 // pred_check
          %p1159 = pneg %p131
        $region46: #{tpu_custom_call.1} parent=43 // pred_check_branch
          %1161 = sbr.rel (%p1159) target = $region48
        $region47: #{tpu_custom_call.1} parent=43 // pred_region
          %s1162 = sand.u32 %s116, 1
          %s1163 = scalar_lea.sflag [#allocation3], %s1162
          %s1164 = sand.u32 %s116, 1
          %s1165 = smul.addr %s1164, 16
          %s1166 = scalar_lea.vmem [#allocation2], %s1165
          %1167 = dma.done %s1163, 256
        $region48: #{tpu_custom_call.1} parent=43 // pred_fallthru
          _
      $region44: #{tpu_custom_call.1} parent=5 // pred_fallthru
        _
    $region6: #{tpu_custom_call.1} parent=1 // loop_footer
      %s17 = sadd.s32 1, %s13
    $region7: #{tpu_custom_call.1} parent=1 // loop_footer_branch
      %12 = sbr.rel target = $region3
    $region8: #{tpu_custom_call.1} parent=1 // loop_exit
      _
    %1168 = vsyncpa [#allocation3], 1
    %s1169 = scalar_lea.sflag [#allocation3], 1
    %1170 = vsyncpa %s1169, 1

</llo_original>
